<compile_context>
chip_gen: v7x
topology: tpu7x:2x2x1
jax: 0.10.0
libtpu: 0.0.40
codegen_flags: <defaults>
</compile_context>

<pallas_src>
import jax
import jax.numpy as jnp
from jax.experimental import pallas as pl
from jax.experimental.pallas import tpu as pltpu

_LANE = 128
_ROW_ALIGN = 16  # sublane-friendly for bf16 (16, 128) tiling and f32 (8, 128)


def _round_up(a, b):
    return ((a + b - 1) // b) * b


def _largest_divisor_tile(m, lo, hi, align=_ROW_ALIGN):
    """Largest divisor of m that is a multiple of `align` in [lo, hi], else 0."""
    best = 0
    i = 1
    while i * i <= m:
        if m % i == 0:
            for d in (i, m // i):
                if d % align == 0 and lo <= d <= hi and d > best:
                    best = d
        i += 1
    return best


def _make_kernel(embed_dim, eps=1e-5):
    """Fused patch-projection + bias + LayerNorm kernel (embed_dim static)."""
    inv_n = 1.0 / float(embed_dim)

    def kernel(patches_ref, w_ref, b_ref, gamma_ref, beta_ref, out_ref):
        # patches_ref: (TM, K) bf16   w_ref: (K, E) bf16
        # b/gamma/beta: (1, E) f32    out_ref: (TM, E) out_dtype
        y = jnp.dot(patches_ref[...], w_ref[...],
                    preferred_element_type=jnp.float32) + b_ref[...]

        # LayerNorm over embed_dim, single-pass biased variance (matches torch).
        mean = jnp.sum(y, axis=-1, keepdims=True) * inv_n
        var = jnp.sum(y * y, axis=-1, keepdims=True) * inv_n - mean * mean
        var = jnp.maximum(var, 0.0)  # guard tiny negative cancellation
        y_hat = (y - mean) * jax.lax.rsqrt(var + eps)
        out_ref[...] = (y_hat * gamma_ref[...] + beta_ref[...]).astype(out_ref.dtype)

    return kernel


def patch_embed_forward(x, conv_w, conv_b, ln_gamma, ln_beta, patch_size,
                        out_dtype=jnp.bfloat16):
    """x: (B, C, H, W) f32. conv_w: (embed_dim, C, p, p). Returns (out, Hp, Wp)."""
    B, C, H, W = x.shape
    p = patch_size
    assert H % p == 0 and W % p == 0
    Hp, Wp = H // p, W // p
    embed_dim = conv_w.shape[0]
    K = C * p * p
    M = B * Hp * Wp

    # --- glue: non-overlapping patch extraction (== stride-p conv im2col), with
    # the bf16 downcast fused into the same transpose pass so it moves half the
    # bytes.
    # TODO(synk): fuse this NCHW patch extraction directly into the Pallas
    # kernel; it needs an in-kernel (C, p, W) -> (Wp, C*p*p) lane relayout that
    # Mosaic does not lower reliably for p=4-style shapes, so it stays one XLA
    # pass (one extra bf16 write+read of the (M, K) patches array).
    patches = (x.astype(jnp.bfloat16)
               .reshape(B, C, Hp, p, Wp, p)
               .transpose(0, 2, 4, 1, 3, 5)
               .reshape(M, K))

    # conv weight (E, C, p, p) -> (K, E) bf16; bias / LN params as (1, E) f32.
    w2d = conv_w.reshape(embed_dim, K).T.astype(jnp.bfloat16)
    b2d = conv_b.reshape(1, embed_dim).astype(jnp.float32)
    g2d = ln_gamma.reshape(1, embed_dim).astype(jnp.float32)
    be2d = ln_beta.reshape(1, embed_dim).astype(jnp.float32)

    # --- row-tile selection.  VMEM accounting uses lane-padded K / E and the
    # in-kernel f32 temporaries; tile capped at 2048 rows (already at the HBM
    # roofline) and shrunk so there are >= 2 grid steps on non-trivial M (keeps
    # both v7x TensorCores busy; the extra ~0.35us step is negligible on
    # single-TC v5e/v6e).
    kp = _round_up(K, _LANE)
    ep = _round_up(embed_dim, _LANE)
    out_itemsize = jnp.dtype(out_dtype).itemsize
    bytes_per_row = (2 * kp * 2            # double-buffered bf16 input rows
                     + 2 * ep * out_itemsize   # double-buffered output rows
                     + 3 * ep * 4)         # f32 matmul result + LN temporaries

    budget = 16 << 20
    target = min(2048, max(_ROW_ALIGN,
                           (budget // bytes_per_row) // _ROW_ALIGN * _ROW_ALIGN))
    if M >= 2048:
        target = min(target, max(256, _round_up(pl.cdiv(M, 2), 256)))
    target = min(target, _round_up(M, _ROW_ALIGN))

    # Prefer a tile that divides M exactly -> no row padding and no post-kernel
    # slice copy over the output.
    tm = _largest_divisor_tile(M, max(_ROW_ALIGN, target // 2), target)
    if tm == 0:
        tm = target
    m_pad = _round_up(M, tm)
    grid = (m_pad // tm,)

    if m_pad != M:
        # Zero rows are numerically safe through bias + LayerNorm (finite,
        # no NaN); they are sliced off below.
        patches = jnp.pad(patches, ((0, m_pad - M), (0, 0)))

    invariant_bytes = 2 * kp * ep * 2 + 3 * 2 * ep * 4
    vmem_need = tm * bytes_per_row + invariant_bytes
    vmem_limit = int(min(32 << 20, max(vmem_need + (2 << 20), 16 << 20)))

    out = pl.pallas_call(
        _make_kernel(embed_dim),
        out_shape=jax.ShapeDtypeStruct((m_pad, embed_dim), out_dtype),
        grid_spec=pltpu.PrefetchScalarGridSpec(
            num_scalar_prefetch=0,
            grid=grid,
            in_specs=[
                pl.BlockSpec((tm, K), lambda i: (i, 0)),
                pl.BlockSpec((K, embed_dim), lambda i: (0, 0)),
                pl.BlockSpec((1, embed_dim), lambda i: (0, 0)),
                pl.BlockSpec((1, embed_dim), lambda i: (0, 0)),
                pl.BlockSpec((1, embed_dim), lambda i: (0, 0)),
            ],
            out_specs=pl.BlockSpec((tm, embed_dim), lambda i: (i, 0)),
        ),
        compiler_params=pltpu.CompilerParams(
            dimension_semantics=("parallel",),
            vmem_limit_bytes=vmem_limit,
        ),
    )(patches, w2d, b2d, g2d, be2d)

    if m_pad != M:
        out = out[:M]
    out = out.reshape(B, Hp * Wp, embed_dim)
    return out, Hp, Wp


def _reference(x, conv_w, conv_b, ln_gamma, ln_beta, p):
    """Pure-JAX f32 reference (same math as torch Conv2d stride=p + LayerNorm)."""
    B, C, H, W = x.shape
    Hp, Wp = H // p, W // p
    E = conv_w.shape[0]
    K = C * p * p
    patches = x.reshape(B, C, Hp, p, Wp, p).transpose(0, 2, 4, 1, 3, 5)
    patches = patches.reshape(B * Hp * Wp, K)
    y = patches @ conv_w.reshape(E, K).T + conv_b
    mean = y.mean(-1, keepdims=True)
    var = ((y - mean) ** 2).mean(-1, keepdims=True)
    out = (y - mean) * jax.lax.rsqrt(var + 1e-5) * ln_gamma + ln_beta
    return out.reshape(B, Hp * Wp, E)


if __name__ == "__main__":
    # Small shapes consistent with the module: img 16x16, patch 4, 4 chans, 32 dim.
    B, C, H, W = 2, 4, 16, 16
    patch_size = 4
    embed_dim = 32

    key = jax.random.PRNGKey(0)
    kx, kw, kb = jax.random.split(key, 3)

    x = jax.random.normal(kx, (B, C, H, W), dtype=jnp.float32)
    conv_w = jax.random.normal(kw, (embed_dim, C, patch_size, patch_size),
                               dtype=jnp.float32) * 0.02
    conv_b = jax.random.normal(kb, (embed_dim,), dtype=jnp.float32) * 0.02
    ln_gamma = jnp.ones((embed_dim,), dtype=jnp.float32)   # torch LayerNorm init
    ln_beta = jnp.zeros((embed_dim,), dtype=jnp.float32)

    out, Hp, Wp = patch_embed_forward(x, conv_w, conv_b, ln_gamma, ln_beta,
                                      patch_size)
    out = jax.block_until_ready(out)

    assert out.shape == (B, Hp * Wp, embed_dim), out.shape
    assert Hp == H // patch_size and Wp == W // patch_size

    ref = _reference(x, conv_w, conv_b, ln_gamma, ln_beta, patch_size)
    max_err = float(jnp.max(jnp.abs(out.astype(jnp.float32) - ref)))
    assert max_err < 5e-2, f"max abs err {max_err} too large"

    print("KERNEL_OK")
</pallas_src>

<mosaic_0001>
module attributes {stable_mosaic.version = 11 : i64} {
  func.func @kernel(%arg0: i32, %arg1: memref<32x64xbf16, #tpu.memory_space<vmem>>, %arg2: memref<64x32xbf16, #tpu.memory_space<vmem>>, %arg3: memref<1x32xf32, #tpu.memory_space<vmem>>, %arg4: memref<1x32xf32, #tpu.memory_space<vmem>>, %arg5: memref<1x32xf32, #tpu.memory_space<vmem>>, %arg6: memref<32x32xbf16, #tpu.memory_space<vmem>>) attributes {dimension_semantics = [#tpu.dimension_semantics<parallel>], iteration_bounds = array<i64: 1>, scalar_prefetch = 0 : i64, scratch_operands = 0 : i64, tpu.core_type = #tpu.core_type<tc>, window_params = [{transform_indices = @transform_0, window_bounds = array<i64: 32, 64>}, {pipeline_mode = #tpu.pipeline_mode<synchronous>, transform_indices = @transform_1, window_bounds = array<i64: 64, 32>}, {pipeline_mode = #tpu.pipeline_mode<synchronous>, transform_indices = @transform_2, window_bounds = array<i64: 1, 32>}, {pipeline_mode = #tpu.pipeline_mode<synchronous>, transform_indices = @transform_3, window_bounds = array<i64: 1, 32>}, {pipeline_mode = #tpu.pipeline_mode<synchronous>, transform_indices = @transform_4, window_bounds = array<i64: 1, 32>}, {transform_indices = @transform_5, window_bounds = array<i64: 32, 32>}]} {
    %c0 = arith.constant 0 : index
    %c0_0 = arith.constant 0 : index
    %0 = vector.load %arg1[%c0, %c0_0] : memref<32x64xbf16, #tpu.memory_space<vmem>>, vector<32x64xbf16>
    %c0_1 = arith.constant 0 : index
    %c0_2 = arith.constant 0 : index
    %1 = vector.load %arg2[%c0_1, %c0_2] : memref<64x32xbf16, #tpu.memory_space<vmem>>, vector<64x32xbf16>
    %cst = arith.constant dense<0.000000e+00> : vector<32x32xf32>
    %2 = tpu.matmul %0, %1, %cst {dimension_numbers = #tpu.dot_dimension_numbers<[1], [0], [0], [1], [0, 0, 1, 1], [], []>} : vector<32x64xbf16>, vector<64x32xbf16>, vector<32x32xf32> -> vector<32x32xf32>
    %c0_3 = arith.constant 0 : index
    %c0_4 = arith.constant 0 : index
    %3 = vector.load %arg3[%c0_3, %c0_4] : memref<1x32xf32, #tpu.memory_space<vmem>>, vector<1x32xf32>
    %4 = vector.broadcast %3 : vector<1x32xf32> to vector<32x32xf32>
    %5 = arith.addf %2, %4 : vector<32x32xf32>
    %cst_5 = arith.constant dense<0.000000e+00> : vector<32xf32>
    %6 = vector.multi_reduction <add>, %5, %cst_5 [1] : vector<32x32xf32> to vector<32xf32>
    %7 = vector.shape_cast %6 : vector<32xf32> to vector<32x1xf32>
    %cst_6 = arith.constant 3.125000e-02 : f32
    %8 = vector.broadcast %cst_6 : f32 to vector<32x1xf32>
    %9 = arith.mulf %7, %8 : vector<32x1xf32>
    %10 = arith.mulf %5, %5 : vector<32x32xf32>
    %cst_7 = arith.constant dense<0.000000e+00> : vector<32xf32>
    %11 = vector.multi_reduction <add>, %10, %cst_7 [1] : vector<32x32xf32> to vector<32xf32>
    %12 = vector.shape_cast %11 : vector<32xf32> to vector<32x1xf32>
    %cst_8 = arith.constant 3.125000e-02 : f32
    %13 = vector.broadcast %cst_8 : f32 to vector<32x1xf32>
    %14 = arith.mulf %12, %13 : vector<32x1xf32>
    %15 = arith.mulf %9, %9 : vector<32x1xf32>
    %16 = arith.subf %14, %15 : vector<32x1xf32>
    %cst_9 = arith.constant 0.000000e+00 : f32
    %17 = vector.broadcast %cst_9 : f32 to vector<32x1xf32>
    %18 = arith.maximumf %16, %17 : vector<32x1xf32>
    %19 = vector.broadcast %9 : vector<32x1xf32> to vector<32x32xf32>
    %20 = arith.subf %5, %19 : vector<32x32xf32>
    %cst_10 = arith.constant 9.99999974E-6 : f32
    %21 = vector.broadcast %cst_10 : f32 to vector<32x1xf32>
    %22 = arith.addf %18, %21 : vector<32x1xf32>
    %23 = math.rsqrt %22 : vector<32x1xf32>
    %24 = vector.broadcast %23 : vector<32x1xf32> to vector<32x32xf32>
    %25 = arith.mulf %20, %24 : vector<32x32xf32>
    %c0_11 = arith.constant 0 : index
    %c0_12 = arith.constant 0 : index
    %26 = vector.load %arg4[%c0_11, %c0_12] : memref<1x32xf32, #tpu.memory_space<vmem>>, vector<1x32xf32>
    %27 = vector.broadcast %26 : vector<1x32xf32> to vector<32x32xf32>
    %28 = arith.mulf %25, %27 : vector<32x32xf32>
    %c0_13 = arith.constant 0 : index
    %c0_14 = arith.constant 0 : index
    %29 = vector.load %arg5[%c0_13, %c0_14] : memref<1x32xf32, #tpu.memory_space<vmem>>, vector<1x32xf32>
    %30 = vector.broadcast %29 : vector<1x32xf32> to vector<32x32xf32>
    %31 = arith.addf %28, %30 : vector<32x32xf32>
    %32 = arith.truncf %31 : vector<32x32xf32> to vector<32x32xbf16>
    %c0_15 = arith.constant 0 : index
    %c0_16 = arith.constant 0 : index
    %33 = vector.load %arg6[%c0_15, %c0_16] : memref<32x32xbf16, #tpu.memory_space<vmem>>, vector<32x32xbf16>
    tpu.vector_store %arg6[%c0_15, %c0_16], %32 {strides = array<i32>} : memref<32x32xbf16, #tpu.memory_space<vmem>>, vector<32x32xbf16>,
    return
  }
  func.func @transform_0(%arg0: i32) -> (i32, i32) {
    %c0_i32 = arith.constant 0 : i32
    %c0_i32_0 = arith.constant 0 : i32
    return %arg0, %c0_i32 : i32, i32
  }
  func.func @transform_1(%arg0: i32) -> (i32, i32) {
    %c0_i32 = arith.constant 0 : i32
    %c0_i32_0 = arith.constant 0 : i32
    %c0_i32_1 = arith.constant 0 : i32
    return %c0_i32, %c0_i32_0 : i32, i32
  }
  func.func @transform_2(%arg0: i32) -> (i32, i32) {
    %c0_i32 = arith.constant 0 : i32
    %c0_i32_0 = arith.constant 0 : i32
    %c0_i32_1 = arith.constant 0 : i32
    return %c0_i32, %c0_i32_0 : i32, i32
  }
  func.func @transform_3(%arg0: i32) -> (i32, i32) {
    %c0_i32 = arith.constant 0 : i32
    %c0_i32_0 = arith.constant 0 : i32
    %c0_i32_1 = arith.constant 0 : i32
    return %c0_i32, %c0_i32_0 : i32, i32
  }
  func.func @transform_4(%arg0: i32) -> (i32, i32) {
    %c0_i32 = arith.constant 0 : i32
    %c0_i32_0 = arith.constant 0 : i32
    %c0_i32_1 = arith.constant 0 : i32
    return %c0_i32, %c0_i32_0 : i32, i32
  }
  func.func @transform_5(%arg0: i32) -> (i32, i32) {
    %c0_i32 = arith.constant 0 : i32
    %c0_i32_0 = arith.constant 0 : i32
    return %arg0, %c0_i32 : i32, i32
  }
}

</mosaic_0001>

<llo_original>
// kernel: tpu_custom_call.1
$region0: #{tpu_custom_call.1}
  #allocation0 [shape = 'u32[]', space=smem, size = 0x4, offset = 0x4, fixed_abs, tag = 'smem constant byte address 0x4 - core index']
  #allocation1 [shape = 'u32[144,128]{1,0:T(1,128)}', space=vmem, size = 0x12000, scoped, tag = 'internal scratch']
  %s0 = inlined_call_operand.vmem [shape: bf16[32,64], index: 0, kind: input, shape index: {}]
  %s1 = inlined_call_operand.vmem [shape: bf16[64,32], index: 1, kind: input, shape index: {}]
  %s2 = inlined_call_operand.vmem [shape: f32[1,32], index: 2, kind: input, shape index: {}]
  %s3 = inlined_call_operand.vmem [shape: f32[1,32], index: 3, kind: input, shape index: {}]
  %s4 = inlined_call_operand.vmem [shape: f32[1,32], index: 4, kind: input, shape index: {}]
  %s5 = inlined_call_operand.hbm [shape: bf16[32,32], index: 5, kind: output, shape index: {}]
  %s6 = sld [smem:[#allocation0]]
  $region30: #{tpu_custom_call.1} parent=0
    _
  %s8 = ssub.s32 1, %s6
  %s9 = scalar_select 0, %s8, %s6
  $region1: #{tpu_custom_call.1} parent=0
    #allocation2 [shape = 'u8[8192]{0}', space=vmem, size = 0x2000, scoped, tag = 'output window, operand 0, single buffered']
    #allocation3 [shape = 's32[1]{0}', space=sflag, size = 0x4, scoped, tag = 'scoped memory for tpu_custom_call.1']
    %10 = vsyncpa [#allocation3], 0
    // Predicated region
    $region2: #{tpu_custom_call.1} parent=1 // pred_check
      _
    $region3: #{tpu_custom_call.1} parent=1 // pred_check_branch
      %12 = sbr.rel (0) target = $region5
    $region4: #{tpu_custom_call.1} parent=1 // pred_region
      _
    $region5: #{tpu_custom_call.1} parent=1 // pred_fallthru
      _
    // Predicated region
    $region6: #{tpu_custom_call.1} parent=1 // pred_check
      _
    $region7: #{tpu_custom_call.1} parent=1 // pred_check_branch
      %14 = sbr.rel (0) target = $region9
    $region8: #{tpu_custom_call.1} parent=1 // pred_region
      _
    $region9: #{tpu_custom_call.1} parent=1 // pred_fallthru
      _
    // Predicated region
    $region10: #{tpu_custom_call.1} parent=1 // pred_check
      _
    $region11: #{tpu_custom_call.1} parent=1 // pred_check_branch
      %16 = sbr.rel (0) target = $region13
    $region12: #{tpu_custom_call.1} parent=1 // pred_region
      _
    $region13: #{tpu_custom_call.1} parent=1 // pred_fallthru
      _
    // Predicated region
    $region14: #{tpu_custom_call.1} parent=1 // pred_check
      _
    $region15: #{tpu_custom_call.1} parent=1 // pred_check_branch
      %18 = sbr.rel (0) target = $region17
    $region16: #{tpu_custom_call.1} parent=1 // pred_region
      _
    $region17: #{tpu_custom_call.1} parent=1 // pred_fallthru
      _
    // Predicated region
    $region18: #{tpu_custom_call.1} parent=1 // pred_check
      _
    $region19: #{tpu_custom_call.1} parent=1 // pred_check_branch
      %20 = sbr.rel (0) target = $region21
    $region20: #{tpu_custom_call.1} parent=1 // pred_region
      _
    $region21: #{tpu_custom_call.1} parent=1 // pred_fallthru
      _
    %v22 = vld [vmem:[%s0] sm:$0xf]
    %v23 = vld [vmem:[%s0 + $0x4] sm:$0xf]
    %v24 = vld [vmem:[%s0 + $0x8] sm:$0xf]
    %v25 = vld [vmem:[%s0 + $0xc] sm:$0xf]
    %v26 = vld [vmem:[%s1] sm:$0xf]
    %v27 = vld [vmem:[%s1 + $0x4] sm:$0xf]
    %v28 = vld [vmem:[%s1 + $0x8] sm:$0xf]
    %v29 = vld [vmem:[%s1 + $0xc] sm:$0xf]
    %v30 = vld [vmem:[%s1 + $0x10] sm:$0xf]
    %v31 = vld [vmem:[%s1 + $0x14] sm:$0xf]
    %v32 = vld [vmem:[%s1 + $0x18] sm:$0xf]
    %v33 = vld [vmem:[%s1 + $0x1c] sm:$0xf]
    %v34 = vld [vmem:[%s2] sm:$0x1]
    %v36 = vlaneseq
    %v37 = vshrl.u32 %v36, 7
    %v38 = vsub.s32 0, %v37
    %v39 = vrot.slane %v34, %v38
    %v45 = vunpack.c.l.b16 %v22
    %v46 = vunpack.c.l.b16 %v23
    %v47 = vunpack.c.l.b16 %v24
    %v48 = vunpack.c.l.b16 %v25
    %v49 = vpack.c.b16 %v46, %v45
    %v50 = vpack.c.b16 %v48, %v47
    %v59 = vunpack.c.l.b16 %v26
    %v60 = vunpack.c.l.b16 %v27
    %v61 = vunpack.c.l.b16 %v28
    %v62 = vunpack.c.l.b16 %v29
    %v63 = vunpack.c.l.b16 %v30
    %v64 = vunpack.c.l.b16 %v31
    %v65 = vunpack.c.l.b16 %v32
    %v66 = vunpack.c.l.b16 %v33
    %v67 = vpack.c.b16 %v60, %v59
    %v68 = vpack.c.b16 %v62, %v61
    %v69 = vpack.c.b16 %v64, %v63
    %v70 = vpack.c.b16 %v66, %v65
    %vm75 = vcmask 523264
    %v77 = vsel %vm75, %v49, 0
    %v80 = vsel %vm75, %v50, 0
    %82 = vmatprep.subr.bf16.mxu0 0
    %83 = vmatpush1.bf16.msra.mxu0 %v67
    %84 = vmatprep.subr.bf16.mxu0 0
    %85 = vmatpush1.bf16.msra.mxu0 %v68
    %86 = vmatprep.subr.bf16.mxu0 0
    %87 = vmatpush1.bf16.msra.mxu0 %v69
    %88 = vmatprep.subr.bf16.mxu0 0
    %89 = vmatpush1.bf16.msra.mxu0 %v70
    %90 = vmatprep.subr.bf16.mxu0 0
    %91 = vmatpush1.bf16.msra.mxu0 0
    %92 = vmatprep.subr.bf16.mxu0 0
    %93 = vmatpush1.bf16.msra.mxu0 0
    %94 = vmatprep.subr.bf16.mxu0 0
    %95 = vmatpush1.bf16.msra.mxu0 0
    %96 = vmatprep.subr.bf16.mxu0 0
    %97 = vmatpush1.bf16.msra.mxu0 0
    %98 = vmatprep.subr.bf16.mxu0 0
    %99 = vmatpush1.bf16.msra.mxu0 0
    %100 = vmatprep.subr.bf16.mxu0 0
    %101 = vmatpush1.bf16.msra.mxu0 0
    %102 = vmatprep.subr.bf16.mxu0 0
    %103 = vmatpush1.bf16.msra.mxu0 0
    %104 = vmatprep.subr.bf16.mxu0 0
    %105 = vmatpush1.bf16.msra.mxu0 0
    %106 = vmatprep.subr.bf16.mxu0 0
    %107 = vmatpush1.bf16.msra.mxu0 0
    %108 = vmatprep.subr.bf16.mxu0 0
    %109 = vmatpush1.bf16.msra.mxu0 0
    %110 = vmatprep.subr.bf16.mxu0 0
    %111 = vmatpush1.bf16.msra.mxu0 0
    %112 = vmatprep.subr.bf16.mxu0 0
    %113 = vmatpush1.bf16.msra.mxu0 0
    %114 = vmatprep.mubr.bf16.mxu0 0
    %115 = vmatmul.mubr.bf16.gmra.mrb[0].mxu0 %v77
    %v116 = vpop.f32.mrb[0].mxu0
    %v117 = vadd.f32 %v39, %v116
    %v118 = vpop.f32.mrb[0].mxu0
    %v119 = vpop.f32.mrb[0].mxu0
    %v120 = vadd.f32 %v39, %v119
    %v121 = vpop.f32.mrb[0].mxu0
    %122 = vmatprep.mubr.bf16.mxu0 0
    %123 = vmatmul.mubr.bf16.gmra.mrb[0].mxu0 %v80
    %v124 = vpop.f32.mrb[0].mxu0
    %v125 = vadd.f32 %v39, %v124
    %v126 = vpop.f32.mrb[0].mxu0
    %v127 = vpop.f32.mrb[0].mxu0
    %v128 = vadd.f32 %v39, %v127
    %v129 = vpop.f32.mrb[0].mxu0
    %130 = vdwg.mxu0
    %vm131 = vcmask 261120
    %v132 = vsel %vm131, %v117, 0.0
    %133 = vadd.xlane.f32.xlu0 %v132
    %v134 = vpop.xlane.xlu0 %133
    %v135 = vsel %vm131, %v120, 0.0
    %136 = vadd.xlane.f32.xlu0 %v135
    %v137 = vpop.xlane.xlu0 %136
    %v138 = vsel %vm131, %v125, 0.0
    %139 = vadd.xlane.f32.xlu0 %v138
    %v140 = vpop.xlane.xlu0 %139
    %v141 = vsel %vm131, %v128, 0.0
    %142 = vadd.xlane.f32.xlu0 %v141
    %v143 = vpop.xlane.xlu0 %142
    %v144 = vmul.f32 %v134, 0.03125
    %v145 = vmul.f32 %v137, 0.03125
    %v146 = vmul.f32 %v140, 0.03125
    %v147 = vmul.f32 %v143, 0.03125
    %v148 = vmul.f32 %v117, %v117
    %v149 = vmul.f32 %v120, %v120
    %v150 = vmul.f32 %v125, %v125
    %v151 = vmul.f32 %v128, %v128
    %v152 = vsel %vm131, %v148, 0.0
    %153 = vadd.xlane.f32.xlu0 %v152
    %v154 = vpop.xlane.xlu0 %153
    %v155 = vsel %vm131, %v149, 0.0
    %156 = vadd.xlane.f32.xlu0 %v155
    %v157 = vpop.xlane.xlu0 %156
    %v158 = vsel %vm131, %v150, 0.0
    %159 = vadd.xlane.f32.xlu0 %v158
    %v160 = vpop.xlane.xlu0 %159
    %v161 = vsel %vm131, %v151, 0.0
    %162 = vadd.xlane.f32.xlu0 %v161
    %v163 = vpop.xlane.xlu0 %162
    %v164 = vmul.f32 %v154, 0.03125
    %v165 = vmul.f32 %v157, 0.03125
    %v166 = vmul.f32 %v160, 0.03125
    %v167 = vmul.f32 %v163, 0.03125
    %v168 = vmul.f32 %v144, %v144
    %v169 = vmul.f32 %v145, %v145
    %v170 = vmul.f32 %v146, %v146
    %v171 = vmul.f32 %v147, %v147
    %v172 = vsub.f32 %v164, %v168
    %v173 = vsub.f32 %v165, %v169
    %v174 = vsub.f32 %v166, %v170
    %v175 = vsub.f32 %v167, %v171
    %v176 = vmax.f32 %v172, 0.0
    %v177 = vmax.f32 %v173, 0.0
    %v178 = vmax.f32 %v174, 0.0
    %v179 = vmax.f32 %v175, 0.0
    %v180 = vsub.f32 %v117, %v144
    %v181 = vsub.f32 %v120, %v145
    %v182 = vsub.f32 %v125, %v146
    %v183 = vsub.f32 %v128, %v147
    %v184 = vadd.f32 %v176, 1e-05
    %v185 = vadd.f32 %v177, 1e-05
    %v186 = vadd.f32 %v178, 1e-05
    %v187 = vadd.f32 %v179, 1e-05
    %v188 = vrsqrt.pop %v184
    %v189 = vrsqrt.pop %v185
    %v190 = vrsqrt.pop %v186
    %v191 = vrsqrt.pop %v187
    %v192 = vmul.f32 %v180, %v188
    %v193 = vmul.f32 %v181, %v189
    %v194 = vmul.f32 %v182, %v190
    %v195 = vmul.f32 %v183, %v191
    %v196 = vld [vmem:[%s3] sm:$0x1]
    %v198 = vlaneseq
    %v199 = vshrl.u32 %v198, 7
    %v200 = vsub.s32 0, %v199
    %v201 = vrot.slane %v196, %v200
    %v203 = vmul.f32 %v192, %v201
    %v204 = vmul.f32 %v193, %v201
    %v205 = vmul.f32 %v194, %v201
    %v206 = vmul.f32 %v195, %v201
    %v207 = vld [vmem:[%s4] sm:$0x1]
    %v209 = vlaneseq
    %v210 = vshrl.u32 %v209, 7
    %v211 = vsub.s32 0, %v210
    %v212 = vrot.slane %v207, %v211
    %v214 = vadd.f32 %v203, %v212
    %v215 = vadd.f32 %v204, %v212
    %v216 = vadd.f32 %v205, %v212
    %v217 = vadd.f32 %v206, %v212
    %v218 = vpack.c.bf16 %v215, %v214
    %v219 = vpack.c.bf16 %v217, %v216
    %v222 = vunpack.c.l.b16 %v218
    %v223 = vunpack.c.h.b16 %v218
    %v224 = vunpack.c.l.b16 %v219
    %v225 = vunpack.c.h.b16 %v219
    %v226 = vpack.c.b16 %v222, %v222
    %v227 = vpack.c.b16 %v223, %v223
    %v228 = vpack.c.b16 %v224, %v224
    %v229 = vpack.c.b16 %v225, %v225
    %vm234 = vcmask 257024
    %235 = vst.msk [vmem:[#allocation2] sm:$0xf] %vm234, %v226
    %236 = vst.msk [vmem:[#allocation2 + $0x4] sm:$0xf] %vm234, %v227
    %237 = vst.msk [vmem:[#allocation2 + $0x8] sm:$0xf] %vm234, %v228
    %238 = vst.msk [vmem:[#allocation2 + $0xc] sm:$0xf] %vm234, %v229
    // Predicated region
    $region22: #{tpu_custom_call.1} parent=1 // pred_check
      _
    $region23: #{tpu_custom_call.1} parent=1 // pred_check_branch
      %240 = sbr.rel (0) target = $region25
    $region24: #{tpu_custom_call.1} parent=1 // pred_region
      %s242 = ssub.s32 256, 256
      %243 = vsyncadd [#allocation3], %s242
      %s244 = sshll.u32 [#allocation2], 4
      %s245 = int_to_ptr.vmem [resolvable:$true] %s244
      %250 = dma.vmem_to_hbm [thread:$0]  %s245, 256, %s5, [#allocation3], 64, 64, 4
    $region25: #{tpu_custom_call.1} parent=1 // pred_fallthru
      _
    // Predicated region
    $region26: #{tpu_custom_call.1} parent=1 // pred_check
      _
    $region27: #{tpu_custom_call.1} parent=1 // pred_check_branch
      %252 = sbr.rel (0) target = $region29
    $region28: #{tpu_custom_call.1} parent=1 // pred_region
      %253 = dma.done [#allocation3], 256
    $region29: #{tpu_custom_call.1} parent=1 // pred_fallthru
      _
    %254 = vsyncpa [#allocation3], 1

</llo_original>
